<compile_context>
chip_gen: v5e
topology: v5e:2x2
jax: 0.10.0
libtpu: 0.0.40
codegen_flags: <defaults>
</compile_context>

<pallas_src>
import functools
import math

import jax
import jax.numpy as jnp
import numpy as np
from jax import lax
from jax.experimental import pallas as pl
from jax.experimental.pallas import tpu as pltpu


_STATS_INIT = -1.0e30   # finite init for the running max (never -inf -> no NaN)
_MASK_BIAS = -2.0e30    # added to masked scores; exp(_MASK_BIAS - m) == 0 exactly


# ----------------------------------------------------------------------------
# small helpers
# ----------------------------------------------------------------------------
def _tile(dim, target, align):
    """Largest tile <= target that divides `dim` and is a multiple of `align`.
    Falls back to the full dim for small / odd sizes (always a valid BlockSpec)."""
    if dim <= target:
        return dim
    t = (target // align) * align
    while t >= align:
        if dim % t == 0:
            return t
        t -= align
    return dim


@functools.lru_cache(maxsize=1)
def _vmem_limit_bytes():
    # Budget ~3/4 of physical VMEM (v5e/v6e: 128 MiB, v7x: 64 MiB) so tiles +
    # double buffering keep headroom on every generation.
    try:
        cap = pltpu.get_tpu_info().vmem_capacity_bytes
        return int(cap * 3 // 4)
    except Exception:
        return None


def _compiler_params(dimension_semantics):
    kwargs = dict(dimension_semantics=dimension_semantics)
    limit = _vmem_limit_bytes()
    if limit is not None:
        kwargs["vmem_limit_bytes"] = limit
    return pltpu.CompilerParams(**kwargs)


def _pick_head_group(num_heads, head_dim, dim, target=512):
    """Heads per group: largest divisor of H with g*Hd <= target lanes and a
    lane-dense (multiple-of-128 or full-D) group width."""
    divisors = [g for g in range(1, num_heads + 1) if num_heads % g == 0]
    valid = [g for g in divisors
             if (g * head_dim) % 128 == 0 or g * head_dim == dim]
    if not valid:
        return num_heads
    within = [g for g in valid if g * head_dim <= target]
    return max(within) if within else min(valid)


def rope_tables(seq_len, head_dim, theta):
    """f32 cos table and *sign-folded* sin table (rotate-half baked into sin)."""
    inv_freq = 1.0 / (theta ** (jnp.arange(0, head_dim, 2, dtype=jnp.float32)
                                / head_dim))
    t = jnp.arange(seq_len, dtype=jnp.float32)
    freqs = jnp.outer(t, inv_freq)                      # (S, Hd//2)
    emb = jnp.concatenate([freqs, freqs], axis=-1)      # (S, Hd)
    sign = jnp.concatenate([-jnp.ones((head_dim // 2,), jnp.float32),
                            jnp.ones((head_dim // 2,), jnp.float32)])
    return jnp.cos(emb), jnp.sin(emb) * sign            # both f32


# ----------------------------------------------------------------------------
# fused Q/K/V projection + RoPE kernel (x read once; RoPE applied exactly once)
# ----------------------------------------------------------------------------
def _qkv_rope_kernel(x_ref, wq_ref, wk_ref, wv_ref, cos_ref, sin_ref,
                     q_ref, k_ref, v_ref, acc_q, acc_k, acc_v, *, head_dim):
    k_step = pl.program_id(2)

    @pl.when(k_step == 0)
    def _init():
        acc_q[...] = jnp.zeros_like(acc_q)
        acc_k[...] = jnp.zeros_like(acc_k)
        acc_v[...] = jnp.zeros_like(acc_v)

    x = x_ref[...]
    acc_q[...] += jnp.dot(x, wq_ref[...], preferred_element_type=jnp.float32)
    acc_k[...] += jnp.dot(x, wk_ref[...], preferred_element_type=jnp.float32)
    acc_v[...] += jnp.dot(x, wv_ref[...], preferred_element_type=jnp.float32)

    @pl.when(k_step == pl.num_programs(2) - 1)
    def _finalize():
        hd = head_dim
        cos = cos_ref[...]              # (tm, Hd) f32
        sin = sin_ref[...]              # (tm, Hd) f32, sign folded (rotate-half)
        n_heads_tile = acc_q.shape[1] // hd
        for h in range(n_heads_tile):
            lo = h * hd
            hi = lo + hd
            qh = acc_q[:, lo:hi]
            kh = acc_k[:, lo:hi]
            q_ref[:, lo:hi] = (qh * cos
                               + pltpu.roll(qh, hd // 2, axis=1) * sin
                               ).astype(q_ref.dtype)
            k_ref[:, lo:hi] = (kh * cos
                               + pltpu.roll(kh, hd // 2, axis=1) * sin
                               ).astype(k_ref.dtype)
        v_ref[...] = acc_v[...].astype(v_ref.dtype)


def qkv_projection_rope(x2d, wq, wk, wv, cos, sin, *, head_dim, out_dtype):
    M, K = x2d.shape
    N = wq.shape[1]
    tm = _tile(M, 512, 8)
    # tn must be head-aligned (RoPE per head) and lane-dense.
    align_n = (128 * head_dim) // math.gcd(128, head_dim)
    tn = _tile(N, max(512, align_n), align_n)
    tk = _tile(K, 512, 128)
    assert tn % head_dim == 0

    kernel = functools.partial(_qkv_rope_kernel, head_dim=head_dim)
    w_spec = pl.BlockSpec((tk, tn), lambda i, j, k: (k, j))
    rope_spec = pl.BlockSpec((tm, head_dim), lambda i, j, k: (i, 0))
    return pl.pallas_call(
        kernel,
        out_shape=[jax.ShapeDtypeStruct((M, N), out_dtype) for _ in range(3)],
        grid_spec=pltpu.PrefetchScalarGridSpec(
            num_scalar_prefetch=0,
            grid=(M // tm, N // tn, K // tk),
            in_specs=[
                pl.BlockSpec((tm, tk), lambda i, j, k: (i, k)),
                w_spec, w_spec, w_spec,
                rope_spec, rope_spec,
            ],
            out_specs=[pl.BlockSpec((tm, tn), lambda i, j, k: (i, j))
                       for _ in range(3)],
            scratch_shapes=[pltpu.VMEM((tm, tn), jnp.float32) for _ in range(3)],
        ),
        compiler_params=_compiler_params(("parallel", "parallel", "arbitrary")),
    )(x2d, wq, wk, wv, cos, sin)


# ----------------------------------------------------------------------------
# tiled matmul kernel (c_proj)
# ----------------------------------------------------------------------------
def _matmul_kernel(x_ref, w_ref, o_ref, acc_ref):
    k_step = pl.program_id(2)

    @pl.when(k_step == 0)
    def _init():
        acc_ref[...] = jnp.zeros_like(acc_ref)

    acc_ref[...] += jnp.dot(x_ref[...], w_ref[...],
                            preferred_element_type=jnp.float32)

    @pl.when(k_step == pl.num_programs(2) - 1)
    def _finalize():
        o_ref[...] = acc_ref[...].astype(o_ref.dtype)


def linear(x2d, w, *, out_dtype):
    M, K = x2d.shape
    K2, N = w.shape
    assert K == K2
    tm = _tile(M, 512, 8)
    tn = _tile(N, 512, 128)
    tk = _tile(K, 512, 128)
    return pl.pallas_call(
        _matmul_kernel,
        out_shape=jax.ShapeDtypeStruct((M, N), out_dtype),
        grid_spec=pltpu.PrefetchScalarGridSpec(
            num_scalar_prefetch=0,
            grid=(M // tm, N // tn, K // tk),
            in_specs=[
                pl.BlockSpec((tm, tk), lambda i, j, k: (i, k)),
                pl.BlockSpec((tk, tn), lambda i, j, k: (k, j)),
            ],
            out_specs=pl.BlockSpec((tm, tn), lambda i, j, k: (i, j)),
            scratch_shapes=[pltpu.VMEM((tm, tn), jnp.float32)],
        ),
        compiler_params=_compiler_params(("parallel", "parallel", "arbitrary")),
    )(x2d, w)


# ----------------------------------------------------------------------------
# flash attention kernel
#   grid = (B, head_groups, flattened valid (q_block, kv_block) pairs)
# ----------------------------------------------------------------------------
def _flash_attn_kernel(qmap_ref, kvmap_ref, q_ref, k_ref, v_ref, o_ref,
                       acc_ref, m_ref, l_ref, bias_ref,
                       *, heads_per_group, head_dim, tq, tkv, r, wb, window,
                       softcap):
    t = pl.program_id(2)
    qi = qmap_ref[t]                       # q block index
    kv = kvmap_ref[t]                      # kv block index
    first_kv = jnp.maximum(qi * r - wb, 0)
    last_kv = qi * r + r - 1

    # -- first kv block of a q tile: reset running stats / accumulator --------
    @pl.when(kv == first_kv)
    def _init():
        m_ref[...] = jnp.full_like(m_ref, _STATS_INIT)
        l_ref[...] = jnp.zeros_like(l_ref)
        acc_ref[...] = jnp.zeros_like(acc_ref)

    # -- sliding-window / causal mask bias (only built on window-edge blocks) -
    q_start = qi * tq
    kv_start = kv * tkv
    fully_inside = jnp.logical_and(kv_start + (tkv - 1) <= q_start,
                                   kv_start >= q_start + (tq - 1) - window)

    @pl.when(fully_inside)
    def _no_mask():
        bias_ref[...] = jnp.zeros_like(bias_ref)

    @pl.when(jnp.logical_not(fully_inside))
    def _edge_mask():
        row = q_start + lax.broadcasted_iota(jnp.int32, (tq, tkv), 0)
        col = kv_start + lax.broadcasted_iota(jnp.int32, (tq, tkv), 1)
        ok = jnp.logical_and(col <= row, col >= row - window)
        bias_ref[...] = jnp.where(ok, 0.0, _MASK_BIAS).astype(jnp.float32)

    bias = bias_ref[...]                   # (tq, tkv) f32

    # -- online softmax over the heads of this group ---------------------------
    for h in range(heads_per_group):
        lo = h * head_dim
        hi = lo + head_dim
        qh = q_ref[0, :, lo:hi]            # (tq,  Hd)  already RoPE'd + prescaled
        kh = k_ref[0, :, lo:hi]            # (tkv, Hd)  already RoPE'd
        sc = lax.dot_general(qh, kh, (((1,), (1,)), ((), ())),
                             preferred_element_type=jnp.float32)   # (tq, tkv)
        if softcap > 0.0:
            sc = softcap * jnp.tanh(sc)    # 1/softcap already folded into q
        sc = sc + bias                     # masked entries -> huge negative

        # per-head stats stored broadcast across this head's Hd lanes
        # (lane-dense loads/stores, no masked vst)
        m_prev = m_ref[:, lo:hi]                                    # (tq, Hd)
        m_new = jnp.maximum(m_prev, jnp.max(sc, axis=-1, keepdims=True))
        alpha = jnp.exp(m_prev - m_new)                             # (tq, Hd)
        p = jnp.exp(sc - m_new[:, :1])                              # (tq, tkv)
        l_ref[:, lo:hi] = alpha * l_ref[:, lo:hi] + jnp.sum(p, axis=-1,
                                                            keepdims=True)
        m_ref[:, lo:hi] = m_new

        pv = jnp.dot(p.astype(v_ref.dtype), v_ref[0, :, lo:hi],
                     preferred_element_type=jnp.float32)
        acc_ref[:, lo:hi] = alpha * acc_ref[:, lo:hi] + pv

    # -- last kv block: normalize and write the lane-dense (1, Tq, Dg) tile ----
    @pl.when(kv == last_kv)
    def _finalize():
        approx = jnp.dtype(o_ref.dtype) != jnp.dtype(jnp.float32)
        o_ref[0] = (acc_ref[...]
                    * pl.reciprocal(l_ref[...], approx=approx)).astype(o_ref.dtype)


def flash_attention(q, k, v, *, num_heads, window, softcap):
    B, S, D = q.shape
    Hd = D // num_heads
    window = int(window)

    # q tile decoupled from kv tile: larger q tiles cut K/V HBM re-reads.
    # (Tq target 256 keeps v5e happy and VMEM tiny; raise to 512 on v6e/v7x.)
    tq = _tile(S, 256, 8)
    tkv = _tile(tq, 128, 8)
    assert tq % tkv == 0
    r = tq // tkv
    n_qblocks = S // tq
    wb = -(-window // tkv)                 # ceil(window / tkv)

    g = _pick_head_group(num_heads, Hd, D)
    Dg = g * Hd
    n_groups = D // Dg

    # Flattened (q block, kv block) schedule: only blocks that intersect the
    # causal sliding window are visited (no dead grid steps).
    q_ids, kv_ids = [], []
    for qi in range(n_qblocks):
        lo = max(0, qi * r - wb)
        hi = qi * r + r - 1
        for kb in range(lo, hi + 1):
            q_ids.append(qi)
            kv_ids.append(kb)
    qmap = jnp.asarray(np.asarray(q_ids, dtype=np.int32))
    kvmap = jnp.asarray(np.asarray(kv_ids, dtype=np.int32))
    n_steps = len(q_ids)

    kernel = functools.partial(
        _flash_attn_kernel, heads_per_group=g, head_dim=Hd,
        tq=tq, tkv=tkv, r=r, wb=wb, window=window, softcap=float(softcap))

    q_spec = pl.BlockSpec((1, tq, Dg), lambda b, hg, t, qm, km: (b, qm[t], hg))
    kv_spec = pl.BlockSpec((1, tkv, Dg), lambda b, hg, t, qm, km: (b, km[t], hg))
    out_spec = pl.BlockSpec((1, tq, Dg), lambda b, hg, t, qm, km: (b, qm[t], hg))
    # TODO(synk): on v6e (128 MiB VMEM) pipeline_mode=pl.Buffered(3) on kv_spec
    # can hide residual DMA setup latency once per-step DMA ~= compute.

    return pl.pallas_call(
        kernel,
        out_shape=jax.ShapeDtypeStruct((B, S, D), q.dtype),
        grid_spec=pltpu.PrefetchScalarGridSpec(
            num_scalar_prefetch=2,
            grid=(B, n_groups, n_steps),
            in_specs=[q_spec, kv_spec, kv_spec],
            out_specs=out_spec,
            scratch_shapes=[
                pltpu.VMEM((tq, Dg), jnp.float32),   # unnormalized output acc
                pltpu.VMEM((tq, Dg), jnp.float32),   # running max (per-head, lane-bcast)
                pltpu.VMEM((tq, Dg), jnp.float32),   # running sum (same layout)
                pltpu.VMEM((tq, tkv), jnp.float32),  # mask bias for this block
            ],
        ),
        compiler_params=_compiler_params(("parallel", "parallel", "arbitrary")),
    )(qmap, kvmap, q, k, v)


# ----------------------------------------------------------------------------
# full forward pass
# ----------------------------------------------------------------------------
def attention_forward(x, params, *, num_heads, window_size, softcap, rope_theta,
                      mxu_dtype=jnp.bfloat16):
    B, S, D = x.shape
    assert D % num_heads == 0
    Hd = D // num_heads
    assert Hd % 2 == 0
    out_dtype = x.dtype

    prescale = 1.0 / math.sqrt(Hd)
    if softcap > 0.0:
        prescale = prescale / float(softcap)

    # Scale (and 1/softcap) folded into wq; weights + activations streamed in
    # mxu_dtype (bf16 by default), accumulation everywhere in f32.
    wq = (params["wq"].astype(jnp.float32) * prescale).astype(mxu_dtype)
    wk = params["wk"].astype(mxu_dtype)
    wv = params["wv"].astype(mxu_dtype)
    wo = params["c_proj"].astype(mxu_dtype)
    x2d = x.reshape(B * S, D).astype(mxu_dtype)

    cos, sin = rope_tables(S, Hd, rope_theta)            # (S, Hd) f32
    cos = jnp.tile(cos, (B, 1))                          # (B*S, Hd)
    sin = jnp.tile(sin, (B, 1))

    # Fused Q/K/V projection with RoPE applied once in the finalize step.
    q2d, k2d, v2d = qkv_projection_rope(x2d, wq, wk, wv, cos, sin,
                                        head_dim=Hd, out_dtype=mxu_dtype)
    q = q2d.reshape(B, S, D)
    k = k2d.reshape(B, S, D)
    v = v2d.reshape(B, S, D)

    o = flash_attention(q, k, v, num_heads=num_heads, window=window_size,
                        softcap=softcap)

    y2d = linear(o.reshape(B * S, D), wo, out_dtype=out_dtype)
    # TODO(synk): resid_dropout is identity in eval mode (dropout=0.0).
    return y2d.reshape(B, S, D)


# ----------------------------------------------------------------------------
# pure-JAX reference (high-precision, for correctness check)
# ----------------------------------------------------------------------------
def ref_forward(x, params, *, num_heads, window_size, softcap, rope_theta):
    B, S, D = x.shape
    Hd = D // num_heads
    hp = lax.Precision.HIGHEST
    x2d = x.reshape(B * S, D)

    def proj(w):
        return (jnp.dot(x2d, w, precision=hp)
                .reshape(B, S, num_heads, Hd).transpose(0, 2, 1, 3))

    q, k, v = proj(params["wq"]), proj(params["wk"]), proj(params["wv"])

    inv_freq = 1.0 / (rope_theta ** (jnp.arange(0, Hd, 2, dtype=jnp.float32) / Hd))
    t = jnp.arange(S, dtype=jnp.float32)
    emb = jnp.concatenate([jnp.outer(t, inv_freq)] * 2, axis=-1)
    cos, sin = jnp.cos(emb), jnp.sin(emb)

    def rotate_half(t_):
        return jnp.concatenate([-t_[..., Hd // 2:], t_[..., :Hd // 2]], axis=-1)

    q = q * cos + rotate_half(q) * sin
    k = k * cos + rotate_half(k) * sin
    s = jnp.einsum("bhqd,bhkd->bhqk", q, k, precision=hp) / math.sqrt(Hd)
    if softcap > 0.0:
        s = softcap * jnp.tanh(s / softcap)
    qi = jnp.arange(S)[:, None]
    kj = jnp.arange(S)[None, :]
    allowed = (kj <= qi) & (kj >= qi - window_size)
    s = jnp.where(allowed, s, -jnp.inf)
    p = jax.nn.softmax(s, axis=-1)
    o = jnp.einsum("bhqk,bhkd->bhqd", p, v, precision=hp)
    y = jnp.dot(o.transpose(0, 2, 1, 3).reshape(B * S, D), params["c_proj"],
                precision=hp)
    return y.reshape(B, S, D)


# ----------------------------------------------------------------------------
if __name__ == "__main__":
    def run_case(name, B, S, D, H, window_size, softcap, rope_theta,
                 mxu_dtype, rtol):
        key = jax.random.PRNGKey(0)
        kx, kq, kk, kv, ko = jax.random.split(key, 5)
        x = jax.random.normal(kx, (B, S, D), dtype=jnp.float32)
        init = 0.02
        params = {  # Linear weights stored pre-transposed as (in, out), bias=False.
            "wq": jax.random.normal(kq, (D, D), jnp.float32) * init,
            "wk": jax.random.normal(kk, (D, D), jnp.float32) * init,
            "wv": jax.random.normal(kv, (D, D), jnp.float32) * init,
            "c_proj": jax.random.normal(ko, (D, D), jnp.float32) * init,
        }
        y = attention_forward(x, params, num_heads=H, window_size=window_size,
                              softcap=softcap, rope_theta=rope_theta,
                              mxu_dtype=mxu_dtype)
        y = jax.block_until_ready(y)
        y_ref = ref_forward(x, params, num_heads=H, window_size=window_size,
                            softcap=softcap, rope_theta=rope_theta)
        assert y.shape == (B, S, D)
        err = float(jnp.max(jnp.abs(y.astype(jnp.float32) - y_ref)))
        scale = max(float(jnp.max(jnp.abs(y_ref))), 1e-3)
        assert err <= rtol * scale, (
            f"{name}: max abs err {err} vs scale {scale} (rtol {rtol})")

    # Small config matching the module spec (dim=32, heads=4, seq=8, window=4).
    run_case("small-bf16", B=2, S=8, D=32, H=4, window_size=4, softcap=20.0,
             rope_theta=10000.0, mxu_dtype=jnp.bfloat16, rtol=5e-2)
    run_case("small-f32", B=2, S=8, D=32, H=4, window_size=4, softcap=20.0,
             rope_theta=10000.0, mxu_dtype=jnp.float32, rtol=5e-3)
    # softcap disabled path
    run_case("small-nocap-f32", B=2, S=8, D=32, H=4, window_size=8, softcap=0.0,
             rope_theta=10000.0, mxu_dtype=jnp.float32, rtol=5e-3)
    # Multi-tile config: exercises decoupled q/kv tiles, the flattened
    # (q,kv) schedule, head-group grid axis, window-edge masking and the
    # fully-inside-window fast path, plus the tiled projection matmuls.
    run_case("multitile-f32", B=1, S=512, D=1024, H=8, window_size=384,
             softcap=20.0, rope_theta=10000.0, mxu_dtype=jnp.float32, rtol=1e-2)
    run_case("multitile-bf16", B=1, S=512, D=1024, H=8, window_size=384,
             softcap=20.0, rope_theta=10000.0, mxu_dtype=jnp.bfloat16, rtol=7e-2)

    print("KERNEL_OK")
</pallas_src>

<mosaic_0001>
module attributes {stable_mosaic.version = 11 : i64} {
  func.func @_qkv_rope_kernel(%arg0: i32, %arg1: i32, %arg2: i32, %arg3: memref<16x32xbf16, #tpu.memory_space<vmem>>, %arg4: memref<32x32xbf16, #tpu.memory_space<vmem>>, %arg5: memref<32x32xbf16, #tpu.memory_space<vmem>>, %arg6: memref<32x32xbf16, #tpu.memory_space<vmem>>, %arg7: memref<16x8xf32, #tpu.memory_space<vmem>>, %arg8: memref<16x8xf32, #tpu.memory_space<vmem>>, %arg9: memref<16x32xbf16, #tpu.memory_space<vmem>>, %arg10: memref<16x32xbf16, #tpu.memory_space<vmem>>, %arg11: memref<16x32xbf16, #tpu.memory_space<vmem>>, %arg12: memref<16x32xf32, #tpu.memory_space<vmem>>, %arg13: memref<16x32xf32, #tpu.memory_space<vmem>>, %arg14: memref<16x32xf32, #tpu.memory_space<vmem>>) attributes {dimension_semantics = [#tpu.dimension_semantics<parallel>, #tpu.dimension_semantics<parallel>, #tpu.dimension_semantics<arbitrary>], iteration_bounds = array<i64: 1, 1, 1>, scalar_prefetch = 0 : i64, scratch_operands = 3 : i64, tpu.core_type = #tpu.core_type<tc>, window_params = [{transform_indices = @transform_0, window_bounds = array<i64: 16, 32>}, {transform_indices = @transform_1, window_bounds = array<i64: 32, 32>}, {transform_indices = @transform_2, window_bounds = array<i64: 32, 32>}, {transform_indices = @transform_3, window_bounds = array<i64: 32, 32>}, {transform_indices = @transform_4, window_bounds = array<i64: 16, 8>}, {transform_indices = @transform_5, window_bounds = array<i64: 16, 8>}, {transform_indices = @transform_6, window_bounds = array<i64: 16, 32>}, {transform_indices = @transform_7, window_bounds = array<i64: 16, 32>}, {transform_indices = @transform_8, window_bounds = array<i64: 16, 32>}]} {
    %c0_i32 = arith.constant 0 : i32
    %0 = arith.cmpi eq, %arg2, %c0_i32 : i32
    %1 = arith.extui %0 : i1 to i32
    %c0_i32_0 = arith.constant 0 : i32
    %2 = arith.cmpi ne, %1, %c0_i32_0 : i32
    scf.if %2 {
      %cst_24 = arith.constant 0.000000e+00 : f32
      %22 = vector.broadcast %cst_24 : f32 to vector<16x32xf32>
      %c0_25 = arith.constant 0 : index
      %c0_26 = arith.constant 0 : index
      %23 = vector.load %arg12[%c0_25, %c0_26] : memref<16x32xf32, #tpu.memory_space<vmem>>, vector<16x32xf32>
      tpu.vector_store %arg12[%c0_25, %c0_26], %22 {strides = array<i32>} : memref<16x32xf32, #tpu.memory_space<vmem>>, vector<16x32xf32>,
      %cst_27 = arith.constant 0.000000e+00 : f32
      %24 = vector.broadcast %cst_27 : f32 to vector<16x32xf32>
      %c0_28 = arith.constant 0 : index
      %c0_29 = arith.constant 0 : index
      %25 = vector.load %arg13[%c0_28, %c0_29] : memref<16x32xf32, #tpu.memory_space<vmem>>, vector<16x32xf32>
      tpu.vector_store %arg13[%c0_28, %c0_29], %24 {strides = array<i32>} : memref<16x32xf32, #tpu.memory_space<vmem>>, vector<16x32xf32>,
      %cst_30 = arith.constant 0.000000e+00 : f32
      %26 = vector.broadcast %cst_30 : f32 to vector<16x32xf32>
      %c0_31 = arith.constant 0 : index
      %c0_32 = arith.constant 0 : index
      %27 = vector.load %arg14[%c0_31, %c0_32] : memref<16x32xf32, #tpu.memory_space<vmem>>, vector<16x32xf32>
      tpu.vector_store %arg14[%c0_31, %c0_32], %26 {strides = array<i32>} : memref<16x32xf32, #tpu.memory_space<vmem>>, vector<16x32xf32>,
    } else {
    }
    %c0 = arith.constant 0 : index
    %c0_1 = arith.constant 0 : index
    %3 = vector.load %arg3[%c0, %c0_1] : memref<16x32xbf16, #tpu.memory_space<vmem>>, vector<16x32xbf16>
    %c0_2 = arith.constant 0 : index
    %c0_3 = arith.constant 0 : index
    %4 = vector.load %arg12[%c0_2, %c0_3] : memref<16x32xf32, #tpu.memory_space<vmem>>, vector<16x32xf32>
    %c0_4 = arith.constant 0 : index
    %c0_5 = arith.constant 0 : index
    %5 = vector.load %arg4[%c0_4, %c0_5] : memref<32x32xbf16, #tpu.memory_space<vmem>>, vector<32x32xbf16>
    %cst = arith.constant dense<0.000000e+00> : vector<16x32xf32>
    %6 = tpu.matmul %3, %5, %cst {dimension_numbers = #tpu.dot_dimension_numbers<[1], [0], [0], [1], [0, 0, 1, 1], [], []>} : vector<16x32xbf16>, vector<32x32xbf16>, vector<16x32xf32> -> vector<16x32xf32>
    %7 = arith.addf %4, %6 : vector<16x32xf32>
    %c0_6 = arith.constant 0 : index
    %c0_7 = arith.constant 0 : index
    %8 = vector.load %arg12[%c0_6, %c0_7] : memref<16x32xf32, #tpu.memory_space<vmem>>, vector<16x32xf32>
    tpu.vector_store %arg12[%c0_6, %c0_7], %7 {strides = array<i32>} : memref<16x32xf32, #tpu.memory_space<vmem>>, vector<16x32xf32>,
    %c0_8 = arith.constant 0 : index
    %c0_9 = arith.constant 0 : index
    %9 = vector.load %arg13[%c0_8, %c0_9] : memref<16x32xf32, #tpu.memory_space<vmem>>, vector<16x32xf32>
    %c0_10 = arith.constant 0 : index
    %c0_11 = arith.constant 0 : index
    %10 = vector.load %arg5[%c0_10, %c0_11] : memref<32x32xbf16, #tpu.memory_space<vmem>>, vector<32x32xbf16>
    %cst_12 = arith.constant dense<0.000000e+00> : vector<16x32xf32>
    %11 = tpu.matmul %3, %10, %cst_12 {dimension_numbers = #tpu.dot_dimension_numbers<[1], [0], [0], [1], [0, 0, 1, 1], [], []>} : vector<16x32xbf16>, vector<32x32xbf16>, vector<16x32xf32> -> vector<16x32xf32>
    %12 = arith.addf %9, %11 : vector<16x32xf32>
    %c0_13 = arith.constant 0 : index
    %c0_14 = arith.constant 0 : index
    %13 = vector.load %arg13[%c0_13, %c0_14] : memref<16x32xf32, #tpu.memory_space<vmem>>, vector<16x32xf32>
    tpu.vector_store %arg13[%c0_13, %c0_14], %12 {strides = array<i32>} : memref<16x32xf32, #tpu.memory_space<vmem>>, vector<16x32xf32>,
    %c0_15 = arith.constant 0 : index
    %c0_16 = arith.constant 0 : index
    %14 = vector.load %arg14[%c0_15, %c0_16] : memref<16x32xf32, #tpu.memory_space<vmem>>, vector<16x32xf32>
    %c0_17 = arith.constant 0 : index
    %c0_18 = arith.constant 0 : index
    %15 = vector.load %arg6[%c0_17, %c0_18] : memref<32x32xbf16, #tpu.memory_space<vmem>>, vector<32x32xbf16>
    %cst_19 = arith.constant dense<0.000000e+00> : vector<16x32xf32>
    %16 = tpu.matmul %3, %15, %cst_19 {dimension_numbers = #tpu.dot_dimension_numbers<[1], [0], [0], [1], [0, 0, 1, 1], [], []>} : vector<16x32xbf16>, vector<32x32xbf16>, vector<16x32xf32> -> vector<16x32xf32>
    %17 = arith.addf %14, %16 : vector<16x32xf32>
    %c0_20 = arith.constant 0 : index
    %c0_21 = arith.constant 0 : index
    %18 = vector.load %arg14[%c0_20, %c0_21] : memref<16x32xf32, #tpu.memory_space<vmem>>, vector<16x32xf32>
    tpu.vector_store %arg14[%c0_20, %c0_21], %17 {strides = array<i32>} : memref<16x32xf32, #tpu.memory_space<vmem>>, vector<16x32xf32>,
    %c0_i32_22 = arith.constant 0 : i32
    %19 = arith.cmpi eq, %arg2, %c0_i32_22 : i32
    %20 = arith.extui %19 : i1 to i32
    %c0_i32_23 = arith.constant 0 : i32
    %21 = arith.cmpi ne, %20, %c0_i32_23 : i32
    scf.if %21 {
      %c0_24 = arith.constant 0 : index
      %c0_25 = arith.constant 0 : index
      %22 = vector.load %arg7[%c0_24, %c0_25] : memref<16x8xf32, #tpu.memory_space<vmem>>, vector<16x8xf32>
      %c0_26 = arith.constant 0 : index
      %c0_27 = arith.constant 0 : index
      %23 = vector.load %arg8[%c0_26, %c0_27] : memref<16x8xf32, #tpu.memory_space<vmem>>, vector<16x8xf32>
      %c0_28 = arith.constant 0 : index
      %c0_29 = arith.constant 0 : index
      %24 = vector.load %arg12[%c0_28, %c0_29] : memref<16x32xf32, #tpu.memory_space<vmem>>, vector<16x8xf32>
      %c0_30 = arith.constant 0 : index
      %c0_31 = arith.constant 0 : index
      %25 = vector.load %arg13[%c0_30, %c0_31] : memref<16x32xf32, #tpu.memory_space<vmem>>, vector<16x8xf32>
      %26 = arith.mulf %24, %22 : vector<16x8xf32>
      %c4_i32 = arith.constant 4 : i32
      %27 = tpu.dynamic_rotate %24 by %c4_i32 dim 1 : vector<16x8xf32>, i32 -> vector<16x8xf32>
      %28 = arith.mulf %27, %23 : vector<16x8xf32>
      %29 = arith.addf %26, %28 : vector<16x8xf32>
      %30 = arith.truncf %29 : vector<16x8xf32> to vector<16x8xbf16>
      %c0_32 = arith.constant 0 : index
      %c0_33 = arith.constant 0 : index
      %31 = vector.load %arg9[%c0_32, %c0_33] : memref<16x32xbf16, #tpu.memory_space<vmem>>, vector<16x8xbf16>
      tpu.vector_store %arg9[%c0_32, %c0_33], %30 {strides = array<i32>} : memref<16x32xbf16, #tpu.memory_space<vmem>>, vector<16x8xbf16>,
      %32 = arith.mulf %25, %22 : vector<16x8xf32>
      %c4_i32_34 = arith.constant 4 : i32
      %33 = tpu.dynamic_rotate %25 by %c4_i32_34 dim 1 : vector<16x8xf32>, i32 -> vector<16x8xf32>
      %34 = arith.mulf %33, %23 : vector<16x8xf32>
      %35 = arith.addf %32, %34 : vector<16x8xf32>
      %36 = arith.truncf %35 : vector<16x8xf32> to vector<16x8xbf16>
      %c0_35 = arith.constant 0 : index
      %c0_36 = arith.constant 0 : index
      %37 = vector.load %arg10[%c0_35, %c0_36] : memref<16x32xbf16, #tpu.memory_space<vmem>>, vector<16x8xbf16>
      tpu.vector_store %arg10[%c0_35, %c0_36], %36 {strides = array<i32>} : memref<16x32xbf16, #tpu.memory_space<vmem>>, vector<16x8xbf16>,
      %c0_37 = arith.constant 0 : index
      %c8 = arith.constant 8 : index
      %38 = vector.load %arg12[%c0_37, %c8] : memref<16x32xf32, #tpu.memory_space<vmem>>, vector<16x8xf32>
      %c0_38 = arith.constant 0 : index
      %c8_39 = arith.constant 8 : index
      %39 = vector.load %arg13[%c0_38, %c8_39] : memref<16x32xf32, #tpu.memory_space<vmem>>, vector<16x8xf32>
      %40 = arith.mulf %38, %22 : vector<16x8xf32>
      %c4_i32_40 = arith.constant 4 : i32
      %41 = tpu.dynamic_rotate %38 by %c4_i32_40 dim 1 : vector<16x8xf32>, i32 -> vector<16x8xf32>
      %42 = arith.mulf %41, %23 : vector<16x8xf32>
      %43 = arith.addf %40, %42 : vector<16x8xf32>
      %44 = arith.truncf %43 : vector<16x8xf32> to vector<16x8xbf16>
      %c0_41 = arith.constant 0 : index
      %c8_42 = arith.constant 8 : index
      %45 = vector.load %arg9[%c0_41, %c8_42] : memref<16x32xbf16, #tpu.memory_space<vmem>>, vector<16x8xbf16>
      tpu.vector_store %arg9[%c0_41, %c8_42], %44 {strides = array<i32>} : memref<16x32xbf16, #tpu.memory_space<vmem>>, vector<16x8xbf16>,
      %46 = arith.mulf %39, %22 : vector<16x8xf32>
      %c4_i32_43 = arith.constant 4 : i32
      %47 = tpu.dynamic_rotate %39 by %c4_i32_43 dim 1 : vector<16x8xf32>, i32 -> vector<16x8xf32>
      %48 = arith.mulf %47, %23 : vector<16x8xf32>
      %49 = arith.addf %46, %48 : vector<16x8xf32>
      %50 = arith.truncf %49 : vector<16x8xf32> to vector<16x8xbf16>
      %c0_44 = arith.constant 0 : index
      %c8_45 = arith.constant 8 : index
      %51 = vector.load %arg10[%c0_44, %c8_45] : memref<16x32xbf16, #tpu.memory_space<vmem>>, vector<16x8xbf16>
      tpu.vector_store %arg10[%c0_44, %c8_45], %50 {strides = array<i32>} : memref<16x32xbf16, #tpu.memory_space<vmem>>, vector<16x8xbf16>,
      %c0_46 = arith.constant 0 : index
      %c16 = arith.constant 16 : index
      %52 = vector.load %arg12[%c0_46, %c16] : memref<16x32xf32, #tpu.memory_space<vmem>>, vector<16x8xf32>
      %c0_47 = arith.constant 0 : index
      %c16_48 = arith.constant 16 : index
      %53 = vector.load %arg13[%c0_47, %c16_48] : memref<16x32xf32, #tpu.memory_space<vmem>>, vector<16x8xf32>
      %54 = arith.mulf %52, %22 : vector<16x8xf32>
      %c4_i32_49 = arith.constant 4 : i32
      %55 = tpu.dynamic_rotate %52 by %c4_i32_49 dim 1 : vector<16x8xf32>, i32 -> vector<16x8xf32>
      %56 = arith.mulf %55, %23 : vector<16x8xf32>
      %57 = arith.addf %54, %56 : vector<16x8xf32>
      %58 = arith.truncf %57 : vector<16x8xf32> to vector<16x8xbf16>
      %c0_50 = arith.constant 0 : index
      %c16_51 = arith.constant 16 : index
      %59 = vector.load %arg9[%c0_50, %c16_51] : memref<16x32xbf16, #tpu.memory_space<vmem>>, vector<16x8xbf16>
      tpu.vector_store %arg9[%c0_50, %c16_51], %58 {strides = array<i32>} : memref<16x32xbf16, #tpu.memory_space<vmem>>, vector<16x8xbf16>,
      %60 = arith.mulf %53, %22 : vector<16x8xf32>
      %c4_i32_52 = arith.constant 4 : i32
      %61 = tpu.dynamic_rotate %53 by %c4_i32_52 dim 1 : vector<16x8xf32>, i32 -> vector<16x8xf32>
      %62 = arith.mulf %61, %23 : vector<16x8xf32>
      %63 = arith.addf %60, %62 : vector<16x8xf32>
      %64 = arith.truncf %63 : vector<16x8xf32> to vector<16x8xbf16>
      %c0_53 = arith.constant 0 : index
      %c16_54 = arith.constant 16 : index
      %65 = vector.load %arg10[%c0_53, %c16_54] : memref<16x32xbf16, #tpu.memory_space<vmem>>, vector<16x8xbf16>
      tpu.vector_store %arg10[%c0_53, %c16_54], %64 {strides = array<i32>} : memref<16x32xbf16, #tpu.memory_space<vmem>>, vector<16x8xbf16>,
      %c0_55 = arith.constant 0 : index
      %c24 = arith.constant 24 : index
      %66 = vector.load %arg12[%c0_55, %c24] : memref<16x32xf32, #tpu.memory_space<vmem>>, vector<16x8xf32>
      %c0_56 = arith.constant 0 : index
      %c24_57 = arith.constant 24 : index
      %67 = vector.load %arg13[%c0_56, %c24_57] : memref<16x32xf32, #tpu.memory_space<vmem>>, vector<16x8xf32>
      %68 = arith.mulf %66, %22 : vector<16x8xf32>
      %c4_i32_58 = arith.constant 4 : i32
      %69 = tpu.dynamic_rotate %66 by %c4_i32_58 dim 1 : vector<16x8xf32>, i32 -> vector<16x8xf32>
      %70 = arith.mulf %69, %23 : vector<16x8xf32>
      %71 = arith.addf %68, %70 : vector<16x8xf32>
      %72 = arith.truncf %71 : vector<16x8xf32> to vector<16x8xbf16>
      %c0_59 = arith.constant 0 : index
      %c24_60 = arith.constant 24 : index
      %73 = vector.load %arg9[%c0_59, %c24_60] : memref<16x32xbf16, #tpu.memory_space<vmem>>, vector<16x8xbf16>
      tpu.vector_store %arg9[%c0_59, %c24_60], %72 {strides = array<i32>} : memref<16x32xbf16, #tpu.memory_space<vmem>>, vector<16x8xbf16>,
      %74 = arith.mulf %67, %22 : vector<16x8xf32>
      %c4_i32_61 = arith.constant 4 : i32
      %75 = tpu.dynamic_rotate %67 by %c4_i32_61 dim 1 : vector<16x8xf32>, i32 -> vector<16x8xf32>
      %76 = arith.mulf %75, %23 : vector<16x8xf32>
      %77 = arith.addf %74, %76 : vector<16x8xf32>
      %78 = arith.truncf %77 : vector<16x8xf32> to vector<16x8xbf16>
      %c0_62 = arith.constant 0 : index
      %c24_63 = arith.constant 24 : index
      %79 = vector.load %arg10[%c0_62, %c24_63] : memref<16x32xbf16, #tpu.memory_space<vmem>>, vector<16x8xbf16>
      tpu.vector_store %arg10[%c0_62, %c24_63], %78 {strides = array<i32>} : memref<16x32xbf16, #tpu.memory_space<vmem>>, vector<16x8xbf16>,
      %c0_64 = arith.constant 0 : index
      %c0_65 = arith.constant 0 : index
      %80 = vector.load %arg14[%c0_64, %c0_65] : memref<16x32xf32, #tpu.memory_space<vmem>>, vector<16x32xf32>
      %81 = arith.truncf %80 : vector<16x32xf32> to vector<16x32xbf16>
      %c0_66 = arith.constant 0 : index
      %c0_67 = arith.constant 0 : index
      %82 = vector.load %arg11[%c0_66, %c0_67] : memref<16x32xbf16, #tpu.memory_space<vmem>>, vector<16x32xbf16>
      tpu.vector_store %arg11[%c0_66, %c0_67], %81 {strides = array<i32>} : memref<16x32xbf16, #tpu.memory_space<vmem>>, vector<16x32xbf16>,
    } else {
    }
    return
  }
  func.func @transform_0(%arg0: i32, %arg1: i32, %arg2: i32) -> (i32, i32) {
    %c0_i32 = arith.constant 0 : i32
    return %arg0, %arg2 : i32, i32
  }
  func.func @transform_1(%arg0: i32, %arg1: i32, %arg2: i32) -> (i32, i32) {
    %c0_i32 = arith.constant 0 : i32
    return %arg2, %arg1 : i32, i32
  }
  func.func @transform_2(%arg0: i32, %arg1: i32, %arg2: i32) -> (i32, i32) {
    %c0_i32 = arith.constant 0 : i32
    return %arg2, %arg1 : i32, i32
  }
  func.func @transform_3(%arg0: i32, %arg1: i32, %arg2: i32) -> (i32, i32) {
    %c0_i32 = arith.constant 0 : i32
    return %arg2, %arg1 : i32, i32
  }
  func.func @transform_4(%arg0: i32, %arg1: i32, %arg2: i32) -> (i32, i32) {
    %c0_i32 = arith.constant 0 : i32
    %c0_i32_0 = arith.constant 0 : i32
    return %arg0, %c0_i32 : i32, i32
  }
  func.func @transform_5(%arg0: i32, %arg1: i32, %arg2: i32) -> (i32, i32) {
    %c0_i32 = arith.constant 0 : i32
    %c0_i32_0 = arith.constant 0 : i32
    return %arg0, %c0_i32 : i32, i32
  }
  func.func @transform_6(%arg0: i32, %arg1: i32, %arg2: i32) -> (i32, i32) {
    %c0_i32 = arith.constant 0 : i32
    return %arg0, %arg1 : i32, i32
  }
  func.func @transform_7(%arg0: i32, %arg1: i32, %arg2: i32) -> (i32, i32) {
    %c0_i32 = arith.constant 0 : i32
    return %arg0, %arg1 : i32, i32
  }
  func.func @transform_8(%arg0: i32, %arg1: i32, %arg2: i32) -> (i32, i32) {
    %c0_i32 = arith.constant 0 : i32
    return %arg0, %arg1 : i32, i32
  }
}

</mosaic_0001>

<llo_original>
// kernel: tpu_custom_call.1
$region0: #{tpu_custom_call.1}
  #allocation0 [shape = 'u32[]', space=smem, size = 0x4, offset = 0x4, fixed_abs, tag = 'smem constant byte address 0x4 - core index']
  #allocation1 [shape = 'u32[72,128]{1,0:T(1,128)}', space=vmem, size = 0x9000, scoped, tag = 'internal scratch']
  #allocation2 [shape = 'f32[16,32]{1,0:T(8,128)}', space=vmem, size = 0x2000, scoped, tag = 'scratch operand']
  #allocation3 [shape = 'f32[16,32]{1,0:T(8,128)}', space=vmem, size = 0x2000, scoped, tag = 'scratch operand']
  #allocation4 [shape = 'f32[16,32]{1,0:T(8,128)}', space=vmem, size = 0x2000, scoped, tag = 'scratch operand']
  %s0 = inlined_call_operand.vmem [shape: bf16[16,32], index: 0, kind: input, shape index: {}]
  %s1 = inlined_call_operand.vmem [shape: bf16[32,32], index: 1, kind: input, shape index: {}]
  %s2 = inlined_call_operand.vmem [shape: bf16[32,32], index: 2, kind: input, shape index: {}]
  %s3 = inlined_call_operand.hbm [shape: bf16[32,32], index: 3, kind: input, shape index: {}]
  %s4 = inlined_call_operand.vmem [shape: f32[16,8], index: 4, kind: input, shape index: {}]
  %s5 = inlined_call_operand.vmem [shape: f32[16,8], index: 5, kind: input, shape index: {}]
  %s6 = inlined_call_operand.hbm [shape: bf16[16,32], index: 6, kind: output, shape index: {0}]
  %s7 = inlined_call_operand.hbm [shape: bf16[16,32], index: 7, kind: output, shape index: {1}]
  %s8 = inlined_call_operand.hbm [shape: bf16[16,32], index: 8, kind: output, shape index: {2}]
  %9 = xla_tuple %s6, %s7, %s8
  %s10 = sld [smem:[#allocation0]]
  $region62: #{tpu_custom_call.1} parent=0
    _
  %s12 = ssub.s32 1, %s10
  %s13 = scalar_select 0, %s12, %s10
  $region1: #{tpu_custom_call.1} parent=0
    #allocation5 [shape = 'u8[8192]{0}', space=vmem, size = 0x2000, scoped, tag = 'input window, operand 3, single buffered']
    #allocation6 [shape = 's32[1]{0}', space=sflag, size = 0x4, scoped, tag = 'scoped memory for tpu_custom_call.1']
    #allocation7 [shape = 's32[1]{0}', space=sflag, size = 0x4, scoped, tag = 'scoped memory for tpu_custom_call.1']
    #allocation8 [shape = 'u8[4096]{0}', space=vmem, size = 0x1000, scoped, tag = 'output window, operand 0, single buffered']
    #allocation9 [shape = 'u8[4096]{0}', space=vmem, size = 0x1000, scoped, tag = 'output window, operand 1, single buffered']
    #allocation10 [shape = 's32[1]{0}', space=sflag, size = 0x4, scoped, tag = 'scoped memory for tpu_custom_call.1']
    #allocation11 [shape = 'u8[4096]{0}', space=vmem, size = 0x1000, scoped, tag = 'output window, operand 2, single buffered']
    %14 = vsyncpa [#allocation6], 0
    %15 = vsyncpa [#allocation7], 0
    %16 = vsyncpa [#allocation10], 0
    // Predicated region
    $region2: #{tpu_custom_call.1} parent=1 // pred_check
      _
    $region3: #{tpu_custom_call.1} parent=1 // pred_check_branch
      %18 = sbr.rel (0) target = $region5
    $region4: #{tpu_custom_call.1} parent=1 // pred_region
      _
    $region5: #{tpu_custom_call.1} parent=1 // pred_fallthru
      _
    // Predicated region
    $region6: #{tpu_custom_call.1} parent=1 // pred_check
      _
    $region7: #{tpu_custom_call.1} parent=1 // pred_check_branch
      %20 = sbr.rel (0) target = $region9
    $region8: #{tpu_custom_call.1} parent=1 // pred_region
      _
    $region9: #{tpu_custom_call.1} parent=1 // pred_fallthru
      _
    // Predicated region
    $region10: #{tpu_custom_call.1} parent=1 // pred_check
      _
    $region11: #{tpu_custom_call.1} parent=1 // pred_check_branch
      %22 = sbr.rel (0) target = $region13
    $region12: #{tpu_custom_call.1} parent=1 // pred_region
      _
    $region13: #{tpu_custom_call.1} parent=1 // pred_fallthru
      _
    // Predicated region
    $region14: #{tpu_custom_call.1} parent=1 // pred_check
      _
    $region15: #{tpu_custom_call.1} parent=1 // pred_check_branch
      %24 = sbr.rel (0) target = $region17
    $region16: #{tpu_custom_call.1} parent=1 // pred_region
      %26 = vsyncadd [#allocation6], 0
      %s27 = sshll.u32 %s3, 4
      %s28 = int_to_ptr.hbm [resolvable:$true] %s27
      %s29 = sshll.u32 [#allocation5], 4
      %s30 = int_to_ptr.vmem [resolvable:$true] %s29
      %35 = dma.hbm_to_vmem [thread:$0]  %s28, 256, %s30, [#allocation6], 64, 64, 4
    $region17: #{tpu_custom_call.1} parent=1 // pred_fallthru
      _
    // Predicated region
    $region18: #{tpu_custom_call.1} parent=1 // pred_check
      _
    $region19: #{tpu_custom_call.1} parent=1 // pred_check_branch
      %37 = sbr.rel (0) target = $region21
    $region20: #{tpu_custom_call.1} parent=1 // pred_region
      _
    $region21: #{tpu_custom_call.1} parent=1 // pred_fallthru
      _
    // Predicated region
    $region22: #{tpu_custom_call.1} parent=1 // pred_check
      _
    $region23: #{tpu_custom_call.1} parent=1 // pred_check_branch
      %39 = sbr.rel (0) target = $region25
    $region24: #{tpu_custom_call.1} parent=1 // pred_region
      _
    $region25: #{tpu_custom_call.1} parent=1 // pred_fallthru
      _
    // Predicated region
    $region26: #{tpu_custom_call.1} parent=1 // pred_check
      _
    $region27: #{tpu_custom_call.1} parent=1 // pred_check_branch
      %41 = sbr.rel (0) target = $region29
    $region28: #{tpu_custom_call.1} parent=1 // pred_region
      %43 = dma.done [#allocation6], 256
    $region29: #{tpu_custom_call.1} parent=1 // pred_fallthru
      _
    %p45 = scmp.eq.s32.totalorder 0, 0
    // Predicated region
    $region30: #{tpu_custom_call.1} parent=1 // pred_check
      %p46 = pneg %p45
    $region31: #{tpu_custom_call.1} parent=1 // pred_check_branch
      %48 = sbr.rel (%p46) target = $region33
    $region32: #{tpu_custom_call.1} parent=1 // pred_region
      %vm49 = vcmask 261120
      %50 = vst.msk [vmem:[#allocation2] sm:$0xff] %vm49, 0.0
      %51 = vst.msk [vmem:[#allocation2 + $0x8] sm:$0xff] %vm49, 0.0
      %52 = vst.msk [vmem:[#allocation3] sm:$0xff] %vm49, 0.0
      %53 = vst.msk [vmem:[#allocation3 + $0x8] sm:$0xff] %vm49, 0.0
      %54 = vst.msk [vmem:[#allocation4] sm:$0xff] %vm49, 0.0
      %55 = vst.msk [vmem:[#allocation4 + $0x8] sm:$0xff] %vm49, 0.0
    $region33: #{tpu_custom_call.1} parent=1 // pred_fallthru
      _
    %v56 = vld [vmem:[%s0] sm:$0xf]
    %v57 = vld [vmem:[%s0 + $0x4] sm:$0xf]
    %v58 = vld [vmem:[#allocation2] sm:$0xff]
    %v59 = vld [vmem:[#allocation2 + $0x8] sm:$0xff]
    %v60 = vld [vmem:[%s1] sm:$0xf]
    %v61 = vld [vmem:[%s1 + $0x4] sm:$0xf]
    %v62 = vld [vmem:[%s1 + $0x8] sm:$0xf]
    %v63 = vld [vmem:[%s1 + $0xc] sm:$0xf]
    %v66 = vunpack.c.l.b16 %v56
    %v67 = vunpack.c.l.b16 %v57
    %v68 = vpack.c.b16 %v67, %v66
    %v73 = vunpack.c.l.b16 %v60
    %v74 = vunpack.c.l.b16 %v61
    %v75 = vunpack.c.l.b16 %v62
    %v76 = vunpack.c.l.b16 %v63
    %v77 = vpack.c.b16 %v74, %v73
    %v78 = vpack.c.b16 %v76, %v75
    %vm81 = vcmask 261120
    %v83 = vsel %vm81, %v68, 0
    %85 = vmatpush.bf16.msra.mxu0 0
    %86 = vmatpush.bf16.msra.mxu0 0
    %87 = vmatpush.bf16.msra.mxu0 0
    %88 = vmatpush.bf16.msra.mxu0 0
    %89 = vmatpush.bf16.msra.mxu0 0
    %90 = vmatpush.bf16.msra.mxu0 0
    %91 = vmatpush.bf16.msra.mxu0 %v78
    %92 = vmatpush.bf16.msra.mxu0 %v77
    %93 = vmatmul.bf16.gmra.mxu0 %v83
    %v94 = vpop.f32.mrf.mxu0
    %v95 = vadd.f32 0.0, %v94
    %v96 = vpop.f32.mrf.mxu0
    %v97 = vadd.f32 0.0, %v96
    %98 = vdwg.mxu0
    %v99 = vadd.f32 %v58, %v95
    %v100 = vadd.f32 %v59, %v97
    %101 = vst.msk [vmem:[#allocation2] sm:$0xff] %vm81, %v99
    %102 = vst.msk [vmem:[#allocation2 + $0x8] sm:$0xff] %vm81, %v100
    %v103 = vld [vmem:[#allocation3] sm:$0xff]
    %v104 = vld [vmem:[#allocation3 + $0x8] sm:$0xff]
    %v105 = vld [vmem:[%s2] sm:$0xf]
    %v106 = vld [vmem:[%s2 + $0x4] sm:$0xf]
    %v107 = vld [vmem:[%s2 + $0x8] sm:$0xf]
    %v108 = vld [vmem:[%s2 + $0xc] sm:$0xf]
    %v113 = vunpack.c.l.b16 %v105
    %v114 = vunpack.c.l.b16 %v106
    %v115 = vunpack.c.l.b16 %v107
    %v116 = vunpack.c.l.b16 %v108
    %v117 = vpack.c.b16 %v114, %v113
    %v118 = vpack.c.b16 %v116, %v115
    %121 = vmatpush.bf16.msra.mxu0 0
    %122 = vmatpush.bf16.msra.mxu0 0
    %123 = vmatpush.bf16.msra.mxu0 0
    %124 = vmatpush.bf16.msra.mxu0 0
    %125 = vmatpush.bf16.msra.mxu0 0
    %126 = vmatpush.bf16.msra.mxu0 0
    %127 = vmatpush.bf16.msra.mxu0 %v118
    %128 = vmatpush.bf16.msra.mxu0 %v117
    %129 = vmatmul.bf16.gmra.mxu0 %v83
    %v130 = vpop.f32.mrf.mxu0
    %v131 = vadd.f32 0.0, %v130
    %v132 = vpop.f32.mrf.mxu0
    %v133 = vadd.f32 0.0, %v132
    %134 = vdwg.mxu0
    %v135 = vadd.f32 %v103, %v131
    %v136 = vadd.f32 %v104, %v133
    %137 = vst.msk [vmem:[#allocation3] sm:$0xff] %vm81, %v135
    %138 = vst.msk [vmem:[#allocation3 + $0x8] sm:$0xff] %vm81, %v136
    %v139 = vld [vmem:[#allocation4] sm:$0xff]
    %v140 = vld [vmem:[#allocation4 + $0x8] sm:$0xff]
    %v141 = vld [vmem:[#allocation5] sm:$0xf]
    %v142 = vld [vmem:[#allocation5 + $0x4] sm:$0xf]
    %v143 = vld [vmem:[#allocation5 + $0x8] sm:$0xf]
    %v144 = vld [vmem:[#allocation5 + $0xc] sm:$0xf]
    %v149 = vunpack.c.l.b16 %v141
    %v150 = vunpack.c.l.b16 %v142
    %v151 = vunpack.c.l.b16 %v143
    %v152 = vunpack.c.l.b16 %v144
    %v153 = vpack.c.b16 %v150, %v149
    %v154 = vpack.c.b16 %v152, %v151
    %157 = vmatpush.bf16.msra.mxu0 0
    %158 = vmatpush.bf16.msra.mxu0 0
    %159 = vmatpush.bf16.msra.mxu0 0
    %160 = vmatpush.bf16.msra.mxu0 0
    %161 = vmatpush.bf16.msra.mxu0 0
    %162 = vmatpush.bf16.msra.mxu0 0
    %163 = vmatpush.bf16.msra.mxu0 %v154
    %164 = vmatpush.bf16.msra.mxu0 %v153
    %165 = vmatmul.bf16.gmra.mxu0 %v83
    %v166 = vpop.f32.mrf.mxu0
    %v167 = vadd.f32 0.0, %v166
    %v168 = vpop.f32.mrf.mxu0
    %v169 = vadd.f32 0.0, %v168
    %170 = vdwg.mxu0
    %v171 = vadd.f32 %v139, %v167
    %v172 = vadd.f32 %v140, %v169
    %173 = vst.msk [vmem:[#allocation4] sm:$0xff] %vm81, %v171
    %174 = vst.msk [vmem:[#allocation4 + $0x8] sm:$0xff] %vm81, %v172
    // Predicated region
    $region34: #{tpu_custom_call.1} parent=1 // pred_check
      %p175 = pneg %p45
    $region35: #{tpu_custom_call.1} parent=1 // pred_check_branch
      %177 = sbr.rel (%p175) target = $region37
    $region36: #{tpu_custom_call.1} parent=1 // pred_region
      %v178 = vld [vmem:[%s4] sm:$0xff]
      %v179 = vld [vmem:[%s4 + $0x8] sm:$0xff]
      %v180 = vld [vmem:[%s5] sm:$0xff]
      %v181 = vld [vmem:[%s5 + $0x8] sm:$0xff]
      %v182 = vld [vmem:[#allocation2] sm:$0xff]
      %v183 = vld [vmem:[#allocation2 + $0x8] sm:$0xff]
      %v184 = vld [vmem:[#allocation3] sm:$0xff]
      %v185 = vld [vmem:[#allocation3 + $0x8] sm:$0xff]
      %v186 = vmul.f32 %v182, %v178
      %v187 = vmul.f32 %v183, %v179
      %vm188 = vcmask 1047616
      %189 = vrot.lane.b32.xlu0 %v182, 8
      %v190 = vpop.permute.xlu0 %189
      %v191 = vsel %vm188, %v190, %v182
      %192 = vrot.lane.b32.xlu0 %v183, 8
      %v193 = vpop.permute.xlu0 %192
      %v194 = vsel %vm188, %v193, %v183
      %195 = vrot.lane.b32.xlu0 %v191, 8
      %v196 = vpop.permute.xlu0 %195
      %197 = vrot.lane.b32.xlu0 %v194, 8
      %v198 = vpop.permute.xlu0 %197
      %v199 = vsel %vm188, %v196, %v182
      %v200 = vsel %vm188, %v198, %v183
      %203 = vrot.lane.b32.xlu0 %v180, 4
      %v204 = vpop.permute.xlu0 %203
      %205 = vrot.lane.b32.xlu0 %v181, 4
      %v206 = vpop.permute.xlu0 %205
      %v209 = vmul.f32 %v199, %v204
      %v210 = vmul.f32 %v200, %v206
      %213 = vrot.lane.b32.xlu0 %v209, 124
      %v214 = vpop.permute.xlu0 %213
      %215 = vrot.lane.b32.xlu0 %v210, 124
      %v216 = vpop.permute.xlu0 %215
      %v219 = vadd.f32 %v186, %v214
      %v220 = vadd.f32 %v187, %v216
      %v221 = vpack.c.bf16 %v219, %v219
      %v222 = vpack.c.bf16 %v220, %v220
      %vm223 = vcmask 60416
      %224 = vst.msk [vmem:[#allocation8] sm:$0xf] %vm223, %v221
      %225 = vst.msk [vmem:[#allocation8 + $0x4] sm:$0xf] %vm223, %v222
      %v226 = vmul.f32 %v184, %v178
      %v227 = vmul.f32 %v185, %v179
      %228 = vrot.lane.b32.xlu0 %v184, 8
      %v229 = vpop.permute.xlu0 %228
      %v230 = vsel %vm188, %v229, %v184
      %231 = vrot.lane.b32.xlu0 %v185, 8
      %v232 = vpop.permute.xlu0 %231
      %v233 = vsel %vm188, %v232, %v185
      %234 = vrot.lane.b32.xlu0 %v230, 8
      %v235 = vpop.permute.xlu0 %234
      %236 = vrot.lane.b32.xlu0 %v233, 8
      %v237 = vpop.permute.xlu0 %236
      %v238 = vsel %vm188, %v235, %v184
      %v239 = vsel %vm188, %v237, %v185
      %v240 = vmul.f32 %v238, %v204
      %v241 = vmul.f32 %v239, %v206
      %244 = vrot.lane.b32.xlu0 %v240, 124
      %v245 = vpop.permute.xlu0 %244
      %246 = vrot.lane.b32.xlu0 %v241, 124
      %v247 = vpop.permute.xlu0 %246
      %v250 = vadd.f32 %v226, %v245
      %v251 = vadd.f32 %v227, %v247
      %v252 = vpack.c.bf16 %v250, %v250
      %v253 = vpack.c.bf16 %v251, %v251
      %254 = vst.msk [vmem:[#allocation9] sm:$0xf] %vm223, %v252
      %255 = vst.msk [vmem:[#allocation9 + $0x4] sm:$0xf] %vm223, %v253
      %v256 = vld [vmem:[#allocation2] sm:$0xff]
      %v257 = vld [vmem:[#allocation2 + $0x8] sm:$0xff]
      %v258 = vld [vmem:[#allocation3] sm:$0xff]
      %v259 = vld [vmem:[#allocation3 + $0x8] sm:$0xff]
      %262 = vrot.lane.b32.xlu0 %v178, 8
      %v263 = vpop.permute.xlu0 %262
      %264 = vrot.lane.b32.xlu0 %v179, 8
      %v265 = vpop.permute.xlu0 %264
      %v268 = vmul.f32 %v256, %v263
      %v269 = vmul.f32 %v257, %v265
      %272 = vrot.lane.b32.xlu0 %v256, 120
      %v273 = vpop.permute.xlu0 %272
      %274 = vrot.lane.b32.xlu0 %v257, 120
      %v275 = vpop.permute.xlu0 %274
      %278 = vrot.lane.b32.xlu0 %v273, 8
      %v279 = vpop.permute.xlu0 %278
      %v280 = vsel %vm188, %v279, %v273
      %281 = vrot.lane.b32.xlu0 %v275, 8
      %v282 = vpop.permute.xlu0 %281
      %v283 = vsel %vm188, %v282, %v275
      %284 = vrot.lane.b32.xlu0 %v280, 8
      %v285 = vpop.permute.xlu0 %284
      %286 = vrot.lane.b32.xlu0 %v283, 8
      %v287 = vpop.permute.xlu0 %286
      %v288 = vsel %vm188, %v285, %v273
      %v289 = vsel %vm188, %v287, %v275
      %v290 = vmul.f32 %v288, %v204
      %v291 = vmul.f32 %v289, %v206
      %294 = vrot.lane.b32.xlu0 %v290, 4
      %v295 = vpop.permute.xlu0 %294
      %296 = vrot.lane.b32.xlu0 %v291, 4
      %v297 = vpop.permute.xlu0 %296
      %v300 = vadd.f32 %v268, %v295
      %v301 = vadd.f32 %v269, %v297
      %v302 = vpack.c.bf16 %v300, %v300
      %v303 = vpack.c.bf16 %v301, %v301
      %vm304 = vcmask 126016
      %305 = vst.msk [vmem:[#allocation8] sm:$0xf] %vm304, %v302
      %306 = vst.msk [vmem:[#allocation8 + $0x4] sm:$0xf] %vm304, %v303
      %v307 = vmul.f32 %v258, %v263
      %v308 = vmul.f32 %v259, %v265
      %311 = vrot.lane.b32.xlu0 %v258, 120
      %v312 = vpop.permute.xlu0 %311
      %313 = vrot.lane.b32.xlu0 %v259, 120
      %v314 = vpop.permute.xlu0 %313
      %317 = vrot.lane.b32.xlu0 %v312, 8
      %v318 = vpop.permute.xlu0 %317
      %v319 = vsel %vm188, %v318, %v312
      %320 = vrot.lane.b32.xlu0 %v314, 8
      %v321 = vpop.permute.xlu0 %320
      %v322 = vsel %vm188, %v321, %v314
      %323 = vrot.lane.b32.xlu0 %v319, 8
      %v324 = vpop.permute.xlu0 %323
      %325 = vrot.lane.b32.xlu0 %v322, 8
      %v326 = vpop.permute.xlu0 %325
      %v327 = vsel %vm188, %v324, %v312
      %v328 = vsel %vm188, %v326, %v314
      %v329 = vmul.f32 %v327, %v204
      %v330 = vmul.f32 %v328, %v206
      %333 = vrot.lane.b32.xlu0 %v329, 4
      %v334 = vpop.permute.xlu0 %333
      %335 = vrot.lane.b32.xlu0 %v330, 4
      %v336 = vpop.permute.xlu0 %335
      %v339 = vadd.f32 %v307, %v334
      %v340 = vadd.f32 %v308, %v336
      %v341 = vpack.c.bf16 %v339, %v339
      %v342 = vpack.c.bf16 %v340, %v340
      %343 = vst.msk [vmem:[#allocation9] sm:$0xf] %vm304, %v341
      %344 = vst.msk [vmem:[#allocation9 + $0x4] sm:$0xf] %vm304, %v342
      %v345 = vld [vmem:[#allocation2] sm:$0xff]
      %v346 = vld [vmem:[#allocation2 + $0x8] sm:$0xff]
      %v347 = vld [vmem:[#allocation3] sm:$0xff]
      %v348 = vld [vmem:[#allocation3 + $0x8] sm:$0xff]
      %349 = vrot.lane.b32.xlu0 %v178, 16
      %v350 = vpop.permute.xlu0 %349
      %351 = vrot.lane.b32.xlu0 %v179, 16
      %v352 = vpop.permute.xlu0 %351
      %v355 = vmul.f32 %v345, %v350
      %v356 = vmul.f32 %v346, %v352
      %359 = vrot.lane.b32.xlu0 %v345, 112
      %v360 = vpop.permute.xlu0 %359
      %361 = vrot.lane.b32.xlu0 %v346, 112
      %v362 = vpop.permute.xlu0 %361
      %365 = vrot.lane.b32.xlu0 %v360, 8
      %v366 = vpop.permute.xlu0 %365
      %v367 = vsel %vm188, %v366, %v360
      %368 = vrot.lane.b32.xlu0 %v362, 8
      %v369 = vpop.permute.xlu0 %368
      %v370 = vsel %vm188, %v369, %v362
      %371 = vrot.lane.b32.xlu0 %v367, 8
      %v372 = vpop.permute.xlu0 %371
      %373 = vrot.lane.b32.xlu0 %v370, 8
      %v374 = vpop.permute.xlu0 %373
      %v375 = vsel %vm188, %v372, %v360
      %v376 = vsel %vm188, %v374, %v362
      %v377 = vmul.f32 %v375, %v204
      %v378 = vmul.f32 %v376, %v206
      %381 = vrot.lane.b32.xlu0 %v377, 12
      %v382 = vpop.permute.xlu0 %381
      %383 = vrot.lane.b32.xlu0 %v378, 12
      %v384 = vpop.permute.xlu0 %383
      %v387 = vadd.f32 %v355, %v382
      %v388 = vadd.f32 %v356, %v384
      %v389 = vpack.c.bf16 %v387, %v387
      %v390 = vpack.c.bf16 %v388, %v388
      %vm391 = vcmask 191616
      %392 = vst.msk [vmem:[#allocation8] sm:$0xf] %vm391, %v389
      %393 = vst.msk [vmem:[#allocation8 + $0x4] sm:$0xf] %vm391, %v390
      %v394 = vmul.f32 %v347, %v350
      %v395 = vmul.f32 %v348, %v352
      %398 = vrot.lane.b32.xlu0 %v347, 112
      %v399 = vpop.permute.xlu0 %398
      %400 = vrot.lane.b32.xlu0 %v348, 112
      %v401 = vpop.permute.xlu0 %400
      %404 = vrot.lane.b32.xlu0 %v399, 8
      %v405 = vpop.permute.xlu0 %404
      %v406 = vsel %vm188, %v405, %v399
      %407 = vrot.lane.b32.xlu0 %v401, 8
      %v408 = vpop.permute.xlu0 %407
      %v409 = vsel %vm188, %v408, %v401
      %410 = vrot.lane.b32.xlu0 %v406, 8
      %v411 = vpop.permute.xlu0 %410
      %412 = vrot.lane.b32.xlu0 %v409, 8
      %v413 = vpop.permute.xlu0 %412
      %v414 = vsel %vm188, %v411, %v399
      %v415 = vsel %vm188, %v413, %v401
      %v416 = vmul.f32 %v414, %v204
      %v417 = vmul.f32 %v415, %v206
      %420 = vrot.lane.b32.xlu0 %v416, 12
      %v421 = vpop.permute.xlu0 %420
      %422 = vrot.lane.b32.xlu0 %v417, 12
      %v423 = vpop.permute.xlu0 %422
      %v426 = vadd.f32 %v394, %v421
      %v427 = vadd.f32 %v395, %v423
      %v428 = vpack.c.bf16 %v426, %v426
      %v429 = vpack.c.bf16 %v427, %v427
      %430 = vst.msk [vmem:[#allocation9] sm:$0xf] %vm391, %v428
      %431 = vst.msk [vmem:[#allocation9 + $0x4] sm:$0xf] %vm391, %v429
      %v432 = vld [vmem:[#allocation2] sm:$0xff]
      %v433 = vld [vmem:[#allocation2 + $0x8] sm:$0xff]
      %v434 = vld [vmem:[#allocation3] sm:$0xff]
      %v435 = vld [vmem:[#allocation3 + $0x8] sm:$0xff]
      %436 = vrot.lane.b32.xlu0 %v178, 24
      %v437 = vpop.permute.xlu0 %436
      %438 = vrot.lane.b32.xlu0 %v179, 24
      %v439 = vpop.permute.xlu0 %438
      %v442 = vmul.f32 %v432, %v437
      %v443 = vmul.f32 %v433, %v439
      %446 = vrot.lane.b32.xlu0 %v432, 104
      %v447 = vpop.permute.xlu0 %446
      %448 = vrot.lane.b32.xlu0 %v433, 104
      %v449 = vpop.permute.xlu0 %448
      %452 = vrot.lane.b32.xlu0 %v447, 8
      %v453 = vpop.permute.xlu0 %452
      %v454 = vsel %vm188, %v453, %v447
      %455 = vrot.lane.b32.xlu0 %v449, 8
      %v456 = vpop.permute.xlu0 %455
      %v457 = vsel %vm188, %v456, %v449
      %458 = vrot.lane.b32.xlu0 %v454, 8
      %v459 = vpop.permute.xlu0 %458
      %460 = vrot.lane.b32.xlu0 %v457, 8
      %v461 = vpop.permute.xlu0 %460
      %v462 = vsel %vm188, %v459, %v447
      %v463 = vsel %vm188, %v461, %v449
      %v464 = vmul.f32 %v462, %v204
      %v465 = vmul.f32 %v463, %v206
      %468 = vrot.lane.b32.xlu0 %v464, 20
      %v469 = vpop.permute.xlu0 %468
      %470 = vrot.lane.b32.xlu0 %v465, 20
      %v471 = vpop.permute.xlu0 %470
      %v474 = vadd.f32 %v442, %v469
      %v475 = vadd.f32 %v443, %v471
      %v476 = vpack.c.bf16 %v474, %v474
      %v477 = vpack.c.bf16 %v475, %v475
      %vm478 = vcmask 257216
      %479 = vst.msk [vmem:[#allocation8] sm:$0xf] %vm478, %v476
      %480 = vst.msk [vmem:[#allocation8 + $0x4] sm:$0xf] %vm478, %v477
      %v481 = vmul.f32 %v434, %v437
      %v482 = vmul.f32 %v435, %v439
      %485 = vrot.lane.b32.xlu0 %v434, 104
      %v486 = vpop.permute.xlu0 %485
      %487 = vrot.lane.b32.xlu0 %v435, 104
      %v488 = vpop.permute.xlu0 %487
      %491 = vrot.lane.b32.xlu0 %v486, 8
      %v492 = vpop.permute.xlu0 %491
      %v493 = vsel %vm188, %v492, %v486
      %494 = vrot.lane.b32.xlu0 %v488, 8
      %v495 = vpop.permute.xlu0 %494
      %v496 = vsel %vm188, %v495, %v488
      %497 = vrot.lane.b32.xlu0 %v493, 8
      %v498 = vpop.permute.xlu0 %497
      %499 = vrot.lane.b32.xlu0 %v496, 8
      %v500 = vpop.permute.xlu0 %499
      %v501 = vsel %vm188, %v498, %v486
      %v502 = vsel %vm188, %v500, %v488
      %v503 = vmul.f32 %v501, %v204
      %v504 = vmul.f32 %v502, %v206
      %507 = vrot.lane.b32.xlu0 %v503, 20
      %v508 = vpop.permute.xlu0 %507
      %509 = vrot.lane.b32.xlu0 %v504, 20
      %v510 = vpop.permute.xlu0 %509
      %v513 = vadd.f32 %v481, %v508
      %v514 = vadd.f32 %v482, %v510
      %v515 = vpack.c.bf16 %v513, %v513
      %v516 = vpack.c.bf16 %v514, %v514
      %517 = vst.msk [vmem:[#allocation9] sm:$0xf] %vm478, %v515
      %518 = vst.msk [vmem:[#allocation9 + $0x4] sm:$0xf] %vm478, %v516
      %v519 = vld [vmem:[#allocation4] sm:$0xff]
      %v520 = vld [vmem:[#allocation4 + $0x8] sm:$0xff]
      %v521 = vpack.c.bf16 %v519, %v519
      %v522 = vpack.c.bf16 %v520, %v520
      %vm523 = vcmask 257024
      %524 = vst.msk [vmem:[#allocation11] sm:$0xf] %vm523, %v521
      %525 = vst.msk [vmem:[#allocation11 + $0x4] sm:$0xf] %vm523, %v522
    $region37: #{tpu_custom_call.1} parent=1 // pred_fallthru
      _
    // Predicated region
    $region38: #{tpu_custom_call.1} parent=1 // pred_check
      _
    $region39: #{tpu_custom_call.1} parent=1 // pred_check_branch
      %527 = sbr.rel (0) target = $region41
    $region40: #{tpu_custom_call.1} parent=1 // pred_region
      %529 = vsyncadd [#allocation7], 0
      %s530 = sshll.u32 [#allocation8], 4
      %s531 = int_to_ptr.vmem [resolvable:$true] %s530
      %s532 = sshll.u32 %s6, 4
      %s533 = int_to_ptr.hbm [resolvable:$true] %s532
      %538 = dma.vmem_to_hbm [thread:$0]  %s531, 128, %s533, [#allocation7], 64, 64, 4
    $region41: #{tpu_custom_call.1} parent=1 // pred_fallthru
      _
    // Predicated region
    $region42: #{tpu_custom_call.1} parent=1 // pred_check
      _
    $region43: #{tpu_custom_call.1} parent=1 // pred_check_branch
      %540 = sbr.rel (0) target = $region45
    $region44: #{tpu_custom_call.1} parent=1 // pred_region
      %542 = vsyncadd [#allocation10], 0
      %s543 = sshll.u32 [#allocation9], 4
      %s544 = int_to_ptr.vmem [resolvable:$true] %s543
      %s545 = sshll.u32 %s7, 4
      %s546 = int_to_ptr.hbm [resolvable:$true] %s545
      %551 = dma.vmem_to_hbm [thread:$0]  %s544, 128, %s546, [#allocation10], 64, 64, 4
    $region45: #{tpu_custom_call.1} parent=1 // pred_fallthru
      _
    // Predicated region
    $region46: #{tpu_custom_call.1} parent=1 // pred_check
      _
    $region47: #{tpu_custom_call.1} parent=1 // pred_check_branch
      %553 = sbr.rel (0) target = $region49
    $region48: #{tpu_custom_call.1} parent=1 // pred_region
      %555 = vsyncadd [#allocation10], 0
      %s556 = sshll.u32 [#allocation11], 4
      %s557 = int_to_ptr.vmem [resolvable:$true] %s556
      %s558 = sshll.u32 %s8, 4
      %s559 = int_to_ptr.hbm [resolvable:$true] %s558
      %564 = dma.vmem_to_hbm [thread:$0]  %s557, 128, %s559, [#allocation10], 64, 64, 4
    $region49: #{tpu_custom_call.1} parent=1 // pred_fallthru
      _
    // Predicated region
    $region50: #{tpu_custom_call.1} parent=1 // pred_check
      _
    $region51: #{tpu_custom_call.1} parent=1 // pred_check_branch
      %566 = sbr.rel (0) target = $region53
    $region52: #{tpu_custom_call.1} parent=1 // pred_region
      %568 = dma.done [#allocation7], 128
    $region53: #{tpu_custom_call.1} parent=1 // pred_fallthru
      _
    // Predicated region
    $region54: #{tpu_custom_call.1} parent=1 // pred_check
      _
    $region55: #{tpu_custom_call.1} parent=1 // pred_check_branch
      %570 = sbr.rel (0) target = $region57
    $region56: #{tpu_custom_call.1} parent=1 // pred_region
      %572 = dma.done [#allocation10], 128
    $region57: #{tpu_custom_call.1} parent=1 // pred_fallthru
      _
    // Predicated region
    $region58: #{tpu_custom_call.1} parent=1 // pred_check
      _
    $region59: #{tpu_custom_call.1} parent=1 // pred_check_branch
      %574 = sbr.rel (0) target = $region61
    $region60: #{tpu_custom_call.1} parent=1 // pred_region
      %576 = dma.done [#allocation10], 128
    $region61: #{tpu_custom_call.1} parent=1 // pred_fallthru
      _
    %577 = vsyncpa [#allocation6], 1
    %578 = vsyncpa [#allocation7], 1
    %579 = vsyncpa [#allocation10], 1

</llo_original>
